<compile_context>
chip_gen: v7x
topology: tpu7x:2x2x1
jax: 0.10.0
libtpu: 0.0.40
codegen_flags: <defaults>
</compile_context>

<pallas_src>
import functools

import jax
import jax.numpy as jnp
from jax.experimental import pallas as pl
from jax.experimental.pallas import tpu as pltpu


# Streamed `seq` block byte budget. Double-buffered 8 MiB blocks plus the tiny
# mask/out/acc blocks stay well under the explicit 32 MiB scoped-VMEM limit on
# every generation (v5e default scope is 16 MiB, hence the explicit raise;
# v7x's physical VMEM is 64 MiB so 32 MiB scoped is safe there too).
_SEQ_BLOCK_BUDGET_BYTES = 8 * 1024 * 1024
_VMEM_LIMIT_BYTES = 32 * 1024 * 1024
# Cap on the flattened lane-tile (elements) in the mean path so the
# double-buffered output + f32 accumulator also stay comfortably in VMEM.
_MEAN_TM_CAP = 512 * 1024


# ----------------------------- kernels -----------------------------

def _masked_readout_kernel(seq_ref, msk_ref, inv_ref, out_ref, acc_ref,
                           *, n_valid, tn):
    # grid = (B_blocks, H_blocks, N_blocks); N (the reduction) is LAST.
    #   seq_ref: (TB, TN, TH) native dtype     msk_ref: (TB, TN) f32
    #   inv_ref: (1, 1) f32 in SMEM = 1 / sum(msk) (precomputed in the wrapper)
    #   out_ref: (TB, TH)                      acc_ref: (TB, TH) f32 scratch
    n = pl.program_id(2)

    @pl.when(n == 0)
    def _init():
        acc_ref[...] = jnp.zeros_like(acc_ref)

    msk = msk_ref[...].astype(jnp.float32)             # (TB, TN)
    seq = seq_ref[...].astype(jnp.float32)             # (TB, TN, TH)

    if n_valid % tn:
        # Ragged N tail: zero out-of-bounds columns of BOTH operands so that
        # undefined (possibly NaN) garbage never reaches the accumulator.
        col = jax.lax.broadcasted_iota(jnp.int32, msk.shape, 1) + n * tn
        valid = col < n_valid
        msk = jnp.where(valid, msk, 0.0)
        seq = jnp.where(valid[:, :, None], seq, 0.0)

    # Multiply-reduce over N on the MXU (batched K-contraction, q = 1):
    # msk's lane-major N is exactly the MXU K layout and seq's (N, H) tile is
    # the natural RHS, so there is no relayout and the VALU slot stays free.
    acc_ref[...] += jnp.einsum(
        "bqn,bnh->bqh", msk[:, None, :], seq,
        preferred_element_type=jnp.float32)[:, 0, :]

    @pl.when(n == pl.num_programs(2) - 1)
    def _finalize():
        out_ref[...] = (acc_ref[...] * inv_ref[0, 0]).astype(out_ref.dtype)


def _mean_readout_kernel(seq_ref, out_ref, acc_ref, *, inv_b, b_valid, tb):
    # seq flattened to (B, N*H) in the wrapper (lane-dense even for small H).
    # grid = (M_blocks, B_blocks); B (the reduction) is LAST.
    #   seq_ref: (TB, TM) native dtype
    #   out_ref: (1, TM)    acc_ref: (1, TM) f32 scratch
    b = pl.program_id(1)

    @pl.when(b == 0)
    def _init():
        acc_ref[...] = jnp.zeros_like(acc_ref)

    x = seq_ref[...].astype(jnp.float32)                # (TB, TM)
    if b_valid % tb:
        # Ragged B tail: zero out-of-bounds (undefined) rows before reducing.
        row = jax.lax.broadcasted_iota(jnp.int32, x.shape, 0) + b * tb
        x = jnp.where(row < b_valid, x, 0.0)

    acc_ref[...] += jnp.sum(x, axis=0, keepdims=True)

    @pl.when(b == pl.num_programs(1) - 1)
    def _finalize():
        out_ref[...] = (acc_ref[...] * inv_b).astype(out_ref.dtype)


# ----------------------------- tiling helpers -----------------------------

def _batch_tile(B, block_b, default_cap):
    """Batch tile: full B by default (no padding, max DMA amortization)."""
    if block_b is None:
        return B if B <= default_cap else default_cap
    if block_b >= B or B <= 8:
        return B
    return max(8, (min(block_b, B) // 8) * 8)


# ----------------------------- wrappers -----------------------------

def _masked_readout(seq, msk, block_b, block_n):
    B, N, H = seq.shape
    out_dtype = seq.dtype
    itemsize = seq.dtype.itemsize

    # Global denominator (matches torch.sum(msk)), hoisted out of the kernel so
    # the kernel can be tiled over N.  Reciprocal so the finalize is a multiply.
    # No all-zero-mask guard, exactly like PyTorch.
    inv_denom = (1.0 / jnp.sum(msk)).reshape(1, 1).astype(jnp.float32)

    tb = _batch_tile(B, block_b, default_cap=256)

    # Split H (parallel axis) only when it stays 128-aligned and divides evenly;
    # gives the second v7x TensorCore an independent stream when B is tiny.
    th = H // 2 if (H >= 256 and H % 256 == 0) else H

    # N tile: lane axis of msk -> multiple of 128 when tiled, else the full N.
    if block_n is not None:
        desired = block_n
    else:
        desired = _SEQ_BLOCK_BUDGET_BYTES // max(1, tb * th * itemsize)
    if desired >= N or N <= 128:
        tn = N
    else:
        tn = max(128, (desired // 128) * 128)

    kernel = functools.partial(_masked_readout_kernel, n_valid=N, tn=tn)
    out = pl.pallas_call(
        kernel,
        out_shape=jax.ShapeDtypeStruct((B, H), out_dtype),
        grid_spec=pltpu.PrefetchScalarGridSpec(
            num_scalar_prefetch=0,
            grid=(pl.cdiv(B, tb), pl.cdiv(H, th), pl.cdiv(N, tn)),
            in_specs=[
                pl.BlockSpec((tb, tn, th), lambda b, h, n: (b, n, h)),
                pl.BlockSpec((tb, tn), lambda b, h, n: (b, n)),
                pl.BlockSpec(memory_space=pltpu.MemorySpace.SMEM),
            ],
            out_specs=pl.BlockSpec((tb, th), lambda b, h, n: (b, h)),
            scratch_shapes=[pltpu.VMEM((tb, th), jnp.float32)],
        ),
        compiler_params=pltpu.CompilerParams(
            dimension_semantics=("parallel", "parallel", "arbitrary"),
            vmem_limit_bytes=_VMEM_LIMIT_BYTES),
    )(seq, msk, inv_denom)
    return out


def _mean_readout(seq, block_b, block_n):
    B, N, H = seq.shape
    out_dtype = seq.dtype
    itemsize = seq.dtype.itemsize
    NH = N * H

    # Lane-dense layout: flatten (N, H) -> N*H so every DMA row and store uses
    # all 128 lanes even when H < 128.  For a contiguous array this reshape is
    # free (bitcast), and the B reduction is unaffected.
    seq2 = seq.reshape(B, NH)

    tb = _batch_tile(B, block_b, default_cap=512)

    if block_n is not None:
        desired = block_n * H
    else:
        desired = _SEQ_BLOCK_BUDGET_BYTES // max(1, tb * itemsize)
    desired = min(desired, _MEAN_TM_CAP)
    if desired >= NH or NH <= 128:
        tm = NH
    else:
        tm = max(128, (desired // 128) * 128)

    kernel = functools.partial(_mean_readout_kernel,
                               inv_b=1.0 / B, b_valid=B, tb=tb)
    out = pl.pallas_call(
        kernel,
        out_shape=jax.ShapeDtypeStruct((1, NH), out_dtype),
        grid_spec=pltpu.PrefetchScalarGridSpec(
            num_scalar_prefetch=0,
            grid=(pl.cdiv(NH, tm), pl.cdiv(B, tb)),
            in_specs=[pl.BlockSpec((tb, tm), lambda m, b: (b, m))],
            out_specs=pl.BlockSpec((1, tm), lambda m, b: (0, m)),
            scratch_shapes=[pltpu.VMEM((1, tm), jnp.float32)],
        ),
        compiler_params=pltpu.CompilerParams(
            dimension_semantics=("parallel", "arbitrary"),
            vmem_limit_bytes=_VMEM_LIMIT_BYTES),
    )(seq2)
    return out.reshape(N, H)


def avg_readout(seq, msk=None, *, block_b=None, block_n=None):
    """Pallas implementation of AvgReadout.forward(seq, msk).

    seq is streamed in its native dtype; accumulation is float32; output keeps
    seq's dtype. `block_b` / `block_n` optionally override the tile sizes.
    Like the PyTorch module, sum(msk) == 0 yields inf/NaN (no guard).
    """
    seq = jnp.asarray(seq)
    if msk is None:
        return _mean_readout(seq, block_b, block_n)
    msk = jnp.asarray(msk, jnp.float32)   # mask is tiny (no H axis); keep f32
    return _masked_readout(seq, msk, block_b, block_n)


# ----------------------------- demo / check -----------------------------

if __name__ == "__main__":
    key = jax.random.PRNGKey(0)
    k1, k2, k3, k4 = jax.random.split(key, 4)

    # Small shapes implied by the module: batch=2, nodes=8, hidden=32.
    B, N, H = 2, 8, 32
    seq = jax.random.normal(k1, (B, N, H), dtype=jnp.float32)
    msk = (jax.random.uniform(k2, (B, N)) > 0.3).astype(jnp.float32)

    out_masked = jax.block_until_ready(avg_readout(seq, msk))
    ref_masked = jnp.sum(seq * msk[:, :, None], axis=1) / jnp.sum(msk)
    assert out_masked.shape == (B, H)
    assert jnp.allclose(out_masked, ref_masked, atol=1e-5, rtol=1e-5)

    out_mean = jax.block_until_ready(avg_readout(seq, None))
    ref_mean = jnp.mean(seq, axis=0)
    assert out_mean.shape == (N, H)
    assert jnp.allclose(out_mean, ref_mean, atol=1e-5, rtol=1e-5)

    # Larger bf16 case exercising the tiled multi-step reduction with a ragged
    # N tail (no wrapper-side padding anymore) and the ragged-B mean reduction.
    B2, N2, H2 = 12, 300, 128
    seq2 = jax.random.normal(k3, (B2, N2, H2), dtype=jnp.bfloat16)
    msk2 = (jax.random.uniform(k4, (B2, N2)) > 0.5).astype(jnp.float32)

    out2 = jax.block_until_ready(avg_readout(seq2, msk2, block_n=128))
    ref2 = (jnp.sum(seq2.astype(jnp.float32) * msk2[:, :, None], axis=1)
            / jnp.sum(msk2))
    assert out2.shape == (B2, H2)
    assert jnp.allclose(out2.astype(jnp.float32), ref2, atol=2e-2, rtol=2e-2)

    out2m = jax.block_until_ready(avg_readout(seq2, None, block_b=8))
    ref2m = jnp.mean(seq2.astype(jnp.float32), axis=0)
    assert out2m.shape == (N2, H2)
    assert jnp.allclose(out2m.astype(jnp.float32), ref2m, atol=2e-2, rtol=2e-2)

    print("KERNEL_OK")
</pallas_src>

<mosaic_0001>
module attributes {stable_mosaic.version = 11 : i64} {
  func.func @_masked_readout_kernel(%arg0: i32, %arg1: i32, %arg2: i32, %arg3: memref<2x8x32xf32, #tpu.memory_space<vmem>>, %arg4: memref<2x8xf32, #tpu.memory_space<vmem>>, %arg5: memref<1x1xf32, #tpu.memory_space<smem>>, %arg6: memref<2x32xf32, #tpu.memory_space<vmem>>, %arg7: memref<2x32xf32, #tpu.memory_space<vmem>>) attributes {dimension_semantics = [#tpu.dimension_semantics<parallel>, #tpu.dimension_semantics<parallel>, #tpu.dimension_semantics<arbitrary>], iteration_bounds = array<i64: 1, 1, 1>, scalar_prefetch = 0 : i64, scratch_operands = 1 : i64, tpu.core_type = #tpu.core_type<tc>, window_params = [{transform_indices = @transform_0, window_bounds = array<i64: 2, 8, 32>}, {transform_indices = @transform_1, window_bounds = array<i64: 2, 8>}, {transform_indices = @transform_2, window_bounds = array<i64: 1, 1>}, {transform_indices = @transform_3, window_bounds = array<i64: 2, 32>}]} {
    %c0_i32 = arith.constant 0 : i32
    %0 = arith.cmpi eq, %arg2, %c0_i32 : i32
    %1 = arith.extui %0 : i1 to i32
    %c0_i32_0 = arith.constant 0 : i32
    %2 = arith.cmpi ne, %1, %c0_i32_0 : i32
    scf.if %2 {
      %cst_11 = arith.constant 0.000000e+00 : f32
      %14 = vector.broadcast %cst_11 : f32 to vector<2x32xf32>
      %c0_12 = arith.constant 0 : index
      %c0_13 = arith.constant 0 : index
      %15 = vector.load %arg7[%c0_12, %c0_13] : memref<2x32xf32, #tpu.memory_space<vmem>>, vector<2x32xf32>
      tpu.vector_store %arg7[%c0_12, %c0_13], %14 {strides = array<i32>} : memref<2x32xf32, #tpu.memory_space<vmem>>, vector<2x32xf32>,
    } else {
    }
    %c0 = arith.constant 0 : index
    %c0_1 = arith.constant 0 : index
    %3 = vector.load %arg4[%c0, %c0_1] : memref<2x8xf32, #tpu.memory_space<vmem>>, vector<2x8xf32>
    %c0_2 = arith.constant 0 : index
    %c0_3 = arith.constant 0 : index
    %c0_4 = arith.constant 0 : index
    %4 = vector.load %arg3[%c0_2, %c0_3, %c0_4] : memref<2x8x32xf32, #tpu.memory_space<vmem>>, vector<2x8x32xf32>
    %c0_5 = arith.constant 0 : index
    %c0_6 = arith.constant 0 : index
    %5 = vector.load %arg7[%c0_5, %c0_6] : memref<2x32xf32, #tpu.memory_space<vmem>>, vector<2x32xf32>
    %6 = vector.shape_cast %3 : vector<2x8xf32> to vector<2x1x8xf32>
    "tpu.trace_start"() <{level = 10 : i32, message = "bqn,bnh->bqh"}> : () -> ()
    %cst = arith.constant dense<0.000000e+00> : vector<2x1x32xf32>
    %7 = tpu.matmul %6, %4, %cst {dimension_numbers = #tpu.dot_dimension_numbers<[2], [1], [1], [2], [0, 0, 0, 1, 1, 2], [0], [0]>} : vector<2x1x8xf32>, vector<2x8x32xf32>, vector<2x1x32xf32> -> vector<2x1x32xf32>
    "tpu.trace_stop"() : () -> ()
    %8 = vector.shape_cast %7 : vector<2x1x32xf32> to vector<2x32xf32>
    %9 = arith.addf %5, %8 : vector<2x32xf32>
    %c0_7 = arith.constant 0 : index
    %c0_8 = arith.constant 0 : index
    %10 = vector.load %arg7[%c0_7, %c0_8] : memref<2x32xf32, #tpu.memory_space<vmem>>, vector<2x32xf32>
    tpu.vector_store %arg7[%c0_7, %c0_8], %9 {strides = array<i32>} : memref<2x32xf32, #tpu.memory_space<vmem>>, vector<2x32xf32>,
    %c0_i32_9 = arith.constant 0 : i32
    %11 = arith.cmpi eq, %arg2, %c0_i32_9 : i32
    %12 = arith.extui %11 : i1 to i32
    %c0_i32_10 = arith.constant 0 : i32
    %13 = arith.cmpi ne, %12, %c0_i32_10 : i32
    scf.if %13 {
      %c0_11 = arith.constant 0 : index
      %c0_12 = arith.constant 0 : index
      %14 = vector.load %arg7[%c0_11, %c0_12] : memref<2x32xf32, #tpu.memory_space<vmem>>, vector<2x32xf32>
      %c0_13 = arith.constant 0 : index
      %c0_14 = arith.constant 0 : index
      %15 = memref.load %arg5[%c0_13, %c0_14] : memref<1x1xf32, #tpu.memory_space<smem>>
      %16 = vector.broadcast %15 : f32 to vector<2x32xf32>
      %17 = arith.mulf %14, %16 : vector<2x32xf32>
      %c0_15 = arith.constant 0 : index
      %c0_16 = arith.constant 0 : index
      %18 = vector.load %arg6[%c0_15, %c0_16] : memref<2x32xf32, #tpu.memory_space<vmem>>, vector<2x32xf32>
      tpu.vector_store %arg6[%c0_15, %c0_16], %17 {strides = array<i32>} : memref<2x32xf32, #tpu.memory_space<vmem>>, vector<2x32xf32>,
    } else {
    }
    return
  }
  func.func @transform_0(%arg0: i32, %arg1: i32, %arg2: i32) -> (i32, i32, i32) {
    %c0_i32 = arith.constant 0 : i32
    return %arg0, %arg2, %arg1 : i32, i32, i32
  }
  func.func @transform_1(%arg0: i32, %arg1: i32, %arg2: i32) -> (i32, i32) {
    %c0_i32 = arith.constant 0 : i32
    return %arg0, %arg2 : i32, i32
  }
  func.func @transform_2(%arg0: i32, %arg1: i32, %arg2: i32) -> (i32, i32) {
    %c0_i32 = arith.constant 0 : i32
    %c0_i32_0 = arith.constant 0 : i32
    %c0_i32_1 = arith.constant 0 : i32
    return %c0_i32, %c0_i32_0 : i32, i32
  }
  func.func @transform_3(%arg0: i32, %arg1: i32, %arg2: i32) -> (i32, i32) {
    %c0_i32 = arith.constant 0 : i32
    return %arg0, %arg1 : i32, i32
  }
}

</mosaic_0001>

<llo_original>
// kernel: tpu_custom_call.1
$region0: #{tpu_custom_call.1}
  #allocation0 [shape = 'u32[]', space=smem, size = 0x4, offset = 0x4, fixed_abs, tag = 'smem constant byte address 0x4 - core index']
  #allocation1 [shape = 'u32[144,128]{1,0:T(1,128)}', space=vmem, size = 0x12000, scoped, tag = 'internal scratch']
  #allocation2 [shape = 'f32[2,32]{1,0:T(2,128)}', space=vmem, size = 0x400, scoped, tag = 'scratch operand']
  #allocation3 [shape = 'f32[1,1]{1,0:T(1,128)S(6)}', space=smem, size = 0x200, scoped, tag = 'scoped memory for tpu_custom_call.1']
  %s0 = inlined_call_operand.hbm [shape: f32[2,8,32], index: 0, kind: input, shape index: {}]
  %s1 = inlined_call_operand.vmem [shape: f32[2,8], index: 1, kind: input, shape index: {}]
  %s2 = inlined_call_operand.<no memory space> [shape: f32[1,1], index: 2, kind: input, shape index: {}]
  %s3 = inlined_call_operand.hbm [shape: f32[2,32], index: 3, kind: output, shape index: {}]
  %s4 = sld [smem:[#allocation0]]
  $region34: #{tpu_custom_call.1} parent=0
    _
  %s6 = ssub.s32 1, %s4
  %s7 = scalar_select 0, %s6, %s4
  %8 = sst [smem:[#allocation3]] %s2
  $region1: #{tpu_custom_call.1} parent=0
    #allocation4 [shape = 'u8[8192]{0}', space=vmem, size = 0x2000, scoped, tag = 'input window, operand 0, single buffered']
    #allocation5 [shape = 's32[1]{0}', space=sflag, size = 0x4, scoped, tag = 'scoped memory for tpu_custom_call.1']
    #allocation6 [shape = 's32[1]{0}', space=sflag, size = 0x4, scoped, tag = 'scoped memory for tpu_custom_call.1']
    #allocation7 [shape = 'u8[1024]{0}', space=vmem, size = 0x400, scoped, tag = 'output window, operand 0, single buffered']
    %9 = vsyncpa [#allocation5], 0
    %10 = vsyncpa [#allocation6], 0
    // Predicated region
    $region2: #{tpu_custom_call.1} parent=1 // pred_check
      _
    $region3: #{tpu_custom_call.1} parent=1 // pred_check_branch
      %12 = sbr.rel (0) target = $region5
    $region4: #{tpu_custom_call.1} parent=1 // pred_region
      %s14 = ssub.s32 256, 256
      %15 = vsyncadd [#allocation5], %s14
      %s16 = sshll.u32 [#allocation4], 4
      %s17 = int_to_ptr.vmem [resolvable:$true] %s16
      %22 = dma.hbm_to_vmem [thread:$0]  %s0, 256, %s17, [#allocation5], 128, 128, 8
    $region5: #{tpu_custom_call.1} parent=1 // pred_fallthru
      _
    // Predicated region
    $region6: #{tpu_custom_call.1} parent=1 // pred_check
      _
    $region7: #{tpu_custom_call.1} parent=1 // pred_check_branch
      %24 = sbr.rel (0) target = $region9
    $region8: #{tpu_custom_call.1} parent=1 // pred_region
      _
    $region9: #{tpu_custom_call.1} parent=1 // pred_fallthru
      _
    // Predicated region
    $region10: #{tpu_custom_call.1} parent=1 // pred_check
      _
    $region11: #{tpu_custom_call.1} parent=1 // pred_check_branch
      %26 = sbr.rel (0) target = $region13
    $region12: #{tpu_custom_call.1} parent=1 // pred_region
      _
    $region13: #{tpu_custom_call.1} parent=1 // pred_fallthru
      _
    // Predicated region
    $region14: #{tpu_custom_call.1} parent=1 // pred_check
      _
    $region15: #{tpu_custom_call.1} parent=1 // pred_check_branch
      %28 = sbr.rel (0) target = $region17
    $region16: #{tpu_custom_call.1} parent=1 // pred_region
      %29 = dma.done [#allocation5], 256
    $region17: #{tpu_custom_call.1} parent=1 // pred_fallthru
      _
    %p30 = scmp.eq.s32.totalorder 0, 0
    // Predicated region
    $region18: #{tpu_custom_call.1} parent=1 // pred_check
      %p31 = pneg %p30
    $region19: #{tpu_custom_call.1} parent=1 // pred_check_branch
      %33 = sbr.rel (%p31) target = $region21
    $region20: #{tpu_custom_call.1} parent=1 // pred_region
      %vm34 = vcmask 254976
      %35 = vst.msk [vmem:[#allocation2] sm:$0x3] %vm34, 0.0
    $region21: #{tpu_custom_call.1} parent=1 // pred_fallthru
      _
    %v36 = vld [vmem:[%s1] sm:$0x3]
    %v37 = vld [vmem:[#allocation4] sm:$0xff]
    %v38 = vld [vmem:[#allocation4 + $0x8] sm:$0xff]
    %v39 = vld [vmem:[#allocation2] sm:$0x3]
    %v42 = vunpack.c.l.s4 1966171168
    %v43 = vunpack.c.0.s8 %v42
    %v44 = vlaneseq
    %v45 = vshrl.u32 %v44, 7
    %v46 = vsub.s32 %v43, %v45
    %v47 = vrot.slane %v36, %v46
    %v48 = vcombine.high %v47, %v47
    %v50 = vunpack.c.l.s4 1966171168
    %v51 = vunpack.c.0.s8 %v50
    %v52 = vlaneseq
    %v53 = vshrl.u32 %v52, 7
    %v54 = vsub.s32 %v51, %v53
    %v55 = vrot.slane %v47, %v54
    %v57 = vunpack.c.l.s4 1966171168
    %v58 = vunpack.c.0.s8 %v57
    %v59 = vlaneseq
    %v60 = vshrl.u32 %v59, 7
    %v61 = vsub.s32 %v58, %v60
    %v62 = vrot.slane %v48, %v61
    %vm63 = vcmask 64512
    %v64 = vsel %vm63, %v55, 0
    %66 = vmatprep.subr.mxu0 0.0
    %67 = vmatpush1.msra.mxu0 %v37
    %68 = vmatprep.subr.mxu0 0.0
    %69 = vmatpush1.msra.mxu0 0.0
    %70 = vmatprep.subr.mxu0 0.0
    %71 = vmatpush1.msra.mxu0 0.0
    %72 = vmatprep.subr.mxu0 0.0
    %73 = vmatpush1.msra.mxu0 0.0
    %74 = vmatprep.subr.mxu0 0.0
    %75 = vmatpush1.msra.mxu0 0.0
    %76 = vmatprep.subr.mxu0 0.0
    %77 = vmatpush1.msra.mxu0 0.0
    %78 = vmatprep.subr.mxu0 0.0
    %79 = vmatpush1.msra.mxu0 0.0
    %80 = vmatprep.subr.mxu0 0.0
    %81 = vmatpush1.msra.mxu0 0.0
    %82 = vmatprep.subr.mxu0 0.0
    %83 = vmatpush1.msra.mxu0 0.0
    %84 = vmatprep.subr.mxu0 0.0
    %85 = vmatpush1.msra.mxu0 0.0
    %86 = vmatprep.subr.mxu0 0.0
    %87 = vmatpush1.msra.mxu0 0.0
    %88 = vmatprep.subr.mxu0 0.0
    %89 = vmatpush1.msra.mxu0 0.0
    %90 = vmatprep.subr.mxu0 0.0
    %91 = vmatpush1.msra.mxu0 0.0
    %92 = vmatprep.subr.mxu0 0.0
    %93 = vmatpush1.msra.mxu0 0.0
    %94 = vmatprep.subr.mxu0 0.0
    %95 = vmatpush1.msra.mxu0 0.0
    %96 = vmatprep.subr.mxu0 0.0
    %97 = vmatpush1.msra.mxu0 0.0
    %98 = vmatprep.subr.mxu0 0.0
    %99 = vmatpush1.msra.mxu0 0.0
    %100 = vmatprep.subr.mxu0 0.0
    %101 = vmatpush1.msra.mxu0 0.0
    %102 = vmatprep.subr.mxu0 0.0
    %103 = vmatpush1.msra.mxu0 0.0
    %104 = vmatprep.subr.mxu0 0.0
    %105 = vmatpush1.msra.mxu0 0.0
    %106 = vmatprep.subr.mxu0 0.0
    %107 = vmatpush1.msra.mxu0 0.0
    %108 = vmatprep.subr.mxu0 0.0
    %109 = vmatpush1.msra.mxu0 0.0
    %110 = vmatprep.subr.mxu0 0.0
    %111 = vmatpush1.msra.mxu0 0.0
    %112 = vmatprep.subr.mxu0 0.0
    %113 = vmatpush1.msra.mxu0 0.0
    %114 = vmatprep.subr.mxu0 0.0
    %115 = vmatpush1.msra.mxu0 0.0
    %116 = vmatprep.subr.mxu0 0.0
    %117 = vmatpush1.msra.mxu0 0.0
    %118 = vmatprep.subr.mxu0 0.0
    %119 = vmatpush1.msra.mxu0 0.0
    %120 = vmatprep.subr.mxu0 0.0
    %121 = vmatpush1.msra.mxu0 0.0
    %122 = vmatprep.subr.mxu0 0.0
    %123 = vmatpush1.msra.mxu0 0.0
    %124 = vmatprep.subr.mxu0 0.0
    %125 = vmatpush1.msra.mxu0 0.0
    %126 = vmatprep.subr.mxu0 0.0
    %127 = vmatpush1.msra.mxu0 0.0
    %128 = vmatprep.subr.mxu0 0.0
    %129 = vmatpush1.msra.mxu0 0.0
    %130 = vmatprep.mubr.f32.mxu0 0.0
    %131 = vmatmul.mubr.f32.gmra.mrb[0].mxu0 %v64
    %v132 = vpop.f32.mrb[0].mxu0
    %v133 = vadd.f32 0.0, %v132
    %v134 = vpop.f32.mrb[0].mxu0
    %135 = vdwg.mxu0
    %v136 = vsel %vm63, %v62, 0
    %138 = vmatprep.subr.mxu0 0.0
    %139 = vmatpush1.msra.mxu0 %v38
    %140 = vmatprep.subr.mxu0 0.0
    %141 = vmatpush1.msra.mxu0 0.0
    %142 = vmatprep.subr.mxu0 0.0
    %143 = vmatpush1.msra.mxu0 0.0
    %144 = vmatprep.subr.mxu0 0.0
    %145 = vmatpush1.msra.mxu0 0.0
    %146 = vmatprep.subr.mxu0 0.0
    %147 = vmatpush1.msra.mxu0 0.0
    %148 = vmatprep.subr.mxu0 0.0
    %149 = vmatpush1.msra.mxu0 0.0
    %150 = vmatprep.subr.mxu0 0.0
    %151 = vmatpush1.msra.mxu0 0.0
    %152 = vmatprep.subr.mxu0 0.0
    %153 = vmatpush1.msra.mxu0 0.0
    %154 = vmatprep.subr.mxu0 0.0
    %155 = vmatpush1.msra.mxu0 0.0
    %156 = vmatprep.subr.mxu0 0.0
    %157 = vmatpush1.msra.mxu0 0.0
    %158 = vmatprep.subr.mxu0 0.0
    %159 = vmatpush1.msra.mxu0 0.0
    %160 = vmatprep.subr.mxu0 0.0
    %161 = vmatpush1.msra.mxu0 0.0
    %162 = vmatprep.subr.mxu0 0.0
    %163 = vmatpush1.msra.mxu0 0.0
    %164 = vmatprep.subr.mxu0 0.0
    %165 = vmatpush1.msra.mxu0 0.0
    %166 = vmatprep.subr.mxu0 0.0
    %167 = vmatpush1.msra.mxu0 0.0
    %168 = vmatprep.subr.mxu0 0.0
    %169 = vmatpush1.msra.mxu0 0.0
    %170 = vmatprep.subr.mxu0 0.0
    %171 = vmatpush1.msra.mxu0 0.0
    %172 = vmatprep.subr.mxu0 0.0
    %173 = vmatpush1.msra.mxu0 0.0
    %174 = vmatprep.subr.mxu0 0.0
    %175 = vmatpush1.msra.mxu0 0.0
    %176 = vmatprep.subr.mxu0 0.0
    %177 = vmatpush1.msra.mxu0 0.0
    %178 = vmatprep.subr.mxu0 0.0
    %179 = vmatpush1.msra.mxu0 0.0
    %180 = vmatprep.subr.mxu0 0.0
    %181 = vmatpush1.msra.mxu0 0.0
    %182 = vmatprep.subr.mxu0 0.0
    %183 = vmatpush1.msra.mxu0 0.0
    %184 = vmatprep.subr.mxu0 0.0
    %185 = vmatpush1.msra.mxu0 0.0
    %186 = vmatprep.subr.mxu0 0.0
    %187 = vmatpush1.msra.mxu0 0.0
    %188 = vmatprep.subr.mxu0 0.0
    %189 = vmatpush1.msra.mxu0 0.0
    %190 = vmatprep.subr.mxu0 0.0
    %191 = vmatpush1.msra.mxu0 0.0
    %192 = vmatprep.subr.mxu0 0.0
    %193 = vmatpush1.msra.mxu0 0.0
    %194 = vmatprep.subr.mxu0 0.0
    %195 = vmatpush1.msra.mxu0 0.0
    %196 = vmatprep.subr.mxu0 0.0
    %197 = vmatpush1.msra.mxu0 0.0
    %198 = vmatprep.subr.mxu0 0.0
    %199 = vmatpush1.msra.mxu0 0.0
    %200 = vmatprep.subr.mxu0 0.0
    %201 = vmatpush1.msra.mxu0 0.0
    %202 = vmatprep.mubr.f32.mxu0 0.0
    %203 = vmatmul.mubr.f32.gmra.mrb[0].mxu0 %v136
    %v204 = vpop.f32.mrb[0].mxu0
    %v205 = vadd.f32 0.0, %v204
    %v206 = vpop.f32.mrb[0].mxu0
    %207 = vdwg.mxu0
    %v210 = vrot.slane %v205, 7
    %vm211 = vcmask 1041409
    %v212 = vsel %vm211, %v210, %v133
    %v214 = vadd.f32 %v39, %v212
    %vm215 = vcmask 254976
    %216 = vst.msk [vmem:[#allocation2] sm:$0x3] %vm215, %v214
    // Predicated region
    $region22: #{tpu_custom_call.1} parent=1 // pred_check
      %p217 = pneg %p30
    $region23: #{tpu_custom_call.1} parent=1 // pred_check_branch
      %219 = sbr.rel (%p217) target = $region25
    $region24: #{tpu_custom_call.1} parent=1 // pred_region
      %v220 = vld [vmem:[#allocation2] sm:$0x3]
      %s221 = sld [smem:[#allocation3]]
      %v222 = vstv %s221
      %v223 = vmul.f32 %v220, %v222
      %224 = vst.msk [vmem:[#allocation7] sm:$0x3] %vm215, %v223
    $region25: #{tpu_custom_call.1} parent=1 // pred_fallthru
      _
    // Predicated region
    $region26: #{tpu_custom_call.1} parent=1 // pred_check
      _
    $region27: #{tpu_custom_call.1} parent=1 // pred_check_branch
      %226 = sbr.rel (0) target = $region29
    $region28: #{tpu_custom_call.1} parent=1 // pred_region
      %s228 = ssub.s32 32, 32
      %229 = vsyncadd [#allocation6], %s228
      %s231 = sshll.u32 [#allocation7], 4
      %s232 = int_to_ptr.vmem [resolvable:$true] %s231
      %234 = dma.vmem_to_hbm [thread:$0]  %s232, 32, %s3, [#allocation6]
    $region29: #{tpu_custom_call.1} parent=1 // pred_fallthru
      _
    // Predicated region
    $region30: #{tpu_custom_call.1} parent=1 // pred_check
      _
    $region31: #{tpu_custom_call.1} parent=1 // pred_check_branch
      %236 = sbr.rel (0) target = $region33
    $region32: #{tpu_custom_call.1} parent=1 // pred_region
      %237 = dma.done [#allocation6], 32
    $region33: #{tpu_custom_call.1} parent=1 // pred_fallthru
      _
    %238 = vsyncpa [#allocation5], 1
    %239 = vsyncpa [#allocation6], 1

</llo_original>
